<compile_context>
chip_gen: v7x
topology: tpu7x:2x2x1
jax: 0.10.0
libtpu: 0.0.40
codegen_flags: <defaults>
</compile_context>

<pallas_src>
import functools

import jax
import jax.numpy as jnp
import numpy as np
from jax.experimental import pallas as pl
from jax.experimental.pallas import tpu as pltpu

LOGSTD_HIGH = 2.0
LOGSTD_LOW = -5.0
LOG_2PI = float(np.log(2.0 * np.pi))

LANE = 128          # TPU lane width; all packed buffers are 128-lane aligned.
DEFAULT_TB = 512    # batch rows per grid step (near HBM-roofline tile size)


def _round_up(n, m):
    return ((n + m - 1) // m) * m


def actor_kernel(slab_ref, w_ref, v_ref, out_ref, *, act_dim, eps_off):
    """One grid step: TB batch rows of the full actor forward pass.

    slab_ref: (TB, 128) f32   lanes [0:obs_dim)=state, [eps_off:eps_off+A)=eps
    w_ref:    (384, 128) bf16 rows [0:128)=W1, [128:256)=W2, [256:384)=W_heads
                              (head lanes [0:A)=mean weights, [A:2A)=logstd weights)
    v_ref:    (8, 128)  f32   row0=b1, row1=b2, row2=b_heads, row3=scale, row4=bias
    out_ref:  (TB, 128) f32   lanes [0:A)=action, [A:2A)=mean action, lane 2A=log_prob
    """
    A = act_dim
    xin = slab_ref[...]                        # f32, kept for elementwise math
    v = v_ref[...]                             # single (8,128) f32 tile
    mm_dtype = w_ref.dtype

    # ---- MLP backbone: Linear -> ReLU -> Linear -> ReLU (zero padding is exact) ----
    h = jnp.dot(xin.astype(mm_dtype), w_ref[0:LANE, :],
                preferred_element_type=jnp.float32) + v[0:1, :]
    h = jnp.maximum(h, 0.0)
    h = jnp.dot(h.astype(mm_dtype), w_ref[LANE:2 * LANE, :],
                preferred_element_type=jnp.float32) + v[1:2, :]
    h = jnp.maximum(h, 0.0)

    # ---- fused heads: one matmul yields [mean | logstd_raw] in lanes [0:2A) ----
    head = jnp.dot(h.astype(mm_dtype), w_ref[2 * LANE:3 * LANE, :],
                   preferred_element_type=jnp.float32) + v[2:3, :]
    mean = head[:, 0:A]
    log_std = jnp.tanh(head[:, A:2 * A])
    log_std = LOGSTD_LOW + 0.5 * (LOGSTD_HIGH - LOGSTD_LOW) * (log_std + 1.0)
    std = jnp.exp(log_std)

    # ---- reparameterized sample + tanh squash ----
    eps = xin[:, eps_off:eps_off + A]
    x_t = mean + std * eps                     # Normal(mean, std).rsample()
    y_t = jnp.tanh(x_t)

    scale = v[3:4, 0:A]
    bias = v[4:5, 0:A]
    action = y_t * scale + bias
    mean_act = jnp.tanh(mean) * scale + bias

    # ---- log-prob under Normal(mean, std); note (x_t - mean)/std == eps ----
    log_prob = -0.5 * (eps * eps) - log_std - 0.5 * LOG_2PI
    log_prob = log_prob - jnp.log(scale * (1.0 - y_t * y_t) + 1e-6)
    lp = jnp.sum(log_prob, axis=1, keepdims=True)            # (TB, 1)

    # ---- single lane-dense output slab (dense (TB,128) HBM writeback) ----
    out_ref[...] = jnp.zeros(out_ref.shape, out_ref.dtype)
    out_ref[:, 0:A] = action
    out_ref[:, A:2 * A] = mean_act
    out_ref[:, 2 * A:2 * A + 1] = lp


def pack_actor_params(params, action_scale, action_bias, mm_dtype=jnp.bfloat16):
    obs_dim, h0 = params["w1"].shape
    h0b, h1 = params["w2"].shape
    h1b, A = params["wm"].shape
    assert h0 == h0b and h1 == h1b
    # TODO(synk): layers wider than 128 need K/N tiling; this packer assumes
    # obs_dim, hidden widths and 2*act_dim each fit in a single 128-lane block.
    assert max(obs_dim, h0, h1, 2 * A) <= LANE

    def blk(w, rows, cols):
        b = jnp.zeros((LANE, LANE), jnp.float32)
        return b.at[:rows, :cols].set(w)

    w1 = blk(params["w1"], obs_dim, h0)
    w2 = blk(params["w2"], h0, h1)
    wh = jnp.zeros((LANE, LANE), jnp.float32)
    wh = wh.at[:h1, 0:A].set(params["wm"])
    wh = wh.at[:h1, A:2 * A].set(params["ws"])
    wpack = jnp.concatenate([w1, w2, wh], axis=0).astype(mm_dtype)   # (384, 128)

    vpack = jnp.zeros((8, LANE), jnp.float32)
    vpack = vpack.at[0, :h0].set(params["b1"][0])
    vpack = vpack.at[1, :h1].set(params["b2"][0])
    vpack = vpack.at[2, 0:A].set(params["bm"][0])
    vpack = vpack.at[2, A:2 * A].set(params["bs"][0])
    vpack = vpack.at[3, 0:A].set(action_scale[0])
    vpack = vpack.at[4, 0:A].set(action_bias[0])
    return wpack, vpack, A


def actor_forward(x, eps, params, action_scale, action_bias,
                  *, tb=DEFAULT_TB, mm_dtype=jnp.bfloat16):
    B, obs_dim = x.shape
    wpack, vpack, A = pack_actor_params(params, action_scale, action_bias, mm_dtype)
    eps_off = LANE - A
    assert obs_dim + A <= LANE

    TB = min(tb, _round_up(B, 8))
    B_pad = _round_up(B, TB)

    # Pack state + rsample noise into one lane-dense input slab.
    slab = jnp.zeros((B_pad, LANE), jnp.float32)
    slab = slab.at[:B, :obs_dim].set(x)
    slab = slab.at[:B, eps_off:eps_off + A].set(eps)

    kernel = functools.partial(actor_kernel, act_dim=A, eps_off=eps_off)
    out = pl.pallas_call(
        kernel,
        out_shape=jax.ShapeDtypeStruct((B_pad, LANE), jnp.float32),
        grid=(B_pad // TB,),
        in_specs=[
            pl.BlockSpec((TB, LANE), lambda i: (i, 0)),         # x|eps slab (tiled)
            pl.BlockSpec((3 * LANE, LANE), lambda i: (0, 0)),   # packed weights (resident)
            pl.BlockSpec((8, LANE), lambda i: (0, 0)),          # biases/scale/bias
        ],
        out_specs=pl.BlockSpec((TB, LANE), lambda i: (i, 0)),
        compiler_params=pltpu.CompilerParams(
            dimension_semantics=("parallel",)),                 # shards over v7x's 2 TCs
    )(slab, wpack, vpack)

    action = out[:B, 0:A]
    mean = out[:B, A:2 * A]
    log_prob = out[:B, 2 * A:2 * A + 1]
    return action, log_prob, mean


def init_params(key, obs_dim, act_dim, hiddens):
    """Deterministic PyTorch-style (uniform +-1/sqrt(fan_in)) init; W stored [in, out]."""
    def linear(k, fan_in, fan_out):
        kw, kb = jax.random.split(k)
        lim = 1.0 / np.sqrt(fan_in)
        w = jax.random.uniform(kw, (fan_in, fan_out), jnp.float32, -lim, lim)
        b = jax.random.uniform(kb, (1, fan_out), jnp.float32, -lim, lim)
        return w, b

    k1, k2, k3, k4 = jax.random.split(key, 4)
    w1, b1 = linear(k1, obs_dim, hiddens[0])
    w2, b2 = linear(k2, hiddens[0], hiddens[1])
    wm, bm = linear(k3, hiddens[1], act_dim)
    ws, bs = linear(k4, hiddens[1], act_dim)
    return {"w1": w1, "b1": b1, "w2": w2, "b2": b2,
            "wm": wm, "bm": bm, "ws": ws, "bs": bs}


if __name__ == "__main__":
    B, OBS, ACT = 2, 16, 8
    HIDDENS = [32, 32]

    root = jax.random.PRNGKey(0)
    k_param, k_x, k_eps = jax.random.split(root, 3)

    params = init_params(k_param, OBS, ACT, HIDDENS)
    x = jax.random.normal(k_x, (B, OBS), jnp.float32)
    eps = jax.random.normal(k_eps, (B, ACT), jnp.float32)   # Normal.rsample() noise

    # synthetic env action space: high = +2, low = -2  -> scale=2, bias=0
    high = 2.0 * jnp.ones((1, ACT), jnp.float32)
    low = -2.0 * jnp.ones((1, ACT), jnp.float32)
    action_scale = (high - low) / 2.0
    action_bias = (high + low) / 2.0

    fwd = jax.jit(actor_forward)
    action, log_prob, mean = fwd(x, eps, params, action_scale, action_bias)
    jax.block_until_ready((action, log_prob, mean))

    assert action.shape == (B, ACT)
    assert log_prob.shape == (B, 1)
    assert mean.shape == (B, ACT)
    assert bool(jnp.all(jnp.isfinite(action)))
    assert bool(jnp.all(jnp.isfinite(log_prob)))
    assert bool(jnp.all(jnp.isfinite(mean)))
    print("KERNEL_OK")
</pallas_src>

<mosaic_0001>
module attributes {stable_mosaic.version = 11 : i64} {
  func.func @actor_kernel(%arg0: i32, %arg1: memref<8x128xf32, #tpu.memory_space<vmem>>, %arg2: memref<384x128xbf16, #tpu.memory_space<vmem>>, %arg3: memref<8x128xf32, #tpu.memory_space<vmem>>, %arg4: memref<8x128xf32, #tpu.memory_space<vmem>>) attributes {dimension_semantics = [#tpu.dimension_semantics<parallel>], iteration_bounds = array<i64: 1>, scalar_prefetch = 0 : i64, scratch_operands = 0 : i64, tpu.core_type = #tpu.core_type<tc>, window_params = [{transform_indices = @transform_0, window_bounds = array<i64: 8, 128>}, {pipeline_mode = #tpu.pipeline_mode<synchronous>, transform_indices = @transform_1, window_bounds = array<i64: 384, 128>}, {pipeline_mode = #tpu.pipeline_mode<synchronous>, transform_indices = @transform_2, window_bounds = array<i64: 8, 128>}, {transform_indices = @transform_3, window_bounds = array<i64: 8, 128>}]} {
    %c0 = arith.constant 0 : index
    %c0_0 = arith.constant 0 : index
    %0 = vector.load %arg1[%c0, %c0_0] : memref<8x128xf32, #tpu.memory_space<vmem>>, vector<8x128xf32>
    %c0_1 = arith.constant 0 : index
    %c0_2 = arith.constant 0 : index
    %1 = vector.load %arg3[%c0_1, %c0_2] : memref<8x128xf32, #tpu.memory_space<vmem>>, vector<8x128xf32>
    %2 = arith.truncf %0 : vector<8x128xf32> to vector<8x128xbf16>
    %c0_3 = arith.constant 0 : index
    %c0_4 = arith.constant 0 : index
    %3 = vector.load %arg2[%c0_3, %c0_4] : memref<384x128xbf16, #tpu.memory_space<vmem>>, vector<128x128xbf16>
    %cst = arith.constant dense<0.000000e+00> : vector<8x128xf32>
    %4 = tpu.matmul %2, %3, %cst {dimension_numbers = #tpu.dot_dimension_numbers<[1], [0], [0], [1], [0, 0, 1, 1], [], []>} : vector<8x128xbf16>, vector<128x128xbf16>, vector<8x128xf32> -> vector<8x128xf32>
    %5 = vector.extract_strided_slice %1 {offsets = [0, 0], sizes = [1, 128], strides = [1, 1]} : vector<8x128xf32> to vector<1x128xf32>
    %6 = vector.broadcast %5 : vector<1x128xf32> to vector<8x128xf32>
    %7 = arith.addf %4, %6 : vector<8x128xf32>
    %cst_5 = arith.constant 0.000000e+00 : f32
    %8 = vector.broadcast %cst_5 : f32 to vector<8x128xf32>
    %9 = arith.maximumf %7, %8 : vector<8x128xf32>
    %10 = arith.truncf %9 : vector<8x128xf32> to vector<8x128xbf16>
    %c128 = arith.constant 128 : index
    %c0_6 = arith.constant 0 : index
    %11 = vector.load %arg2[%c128, %c0_6] : memref<384x128xbf16, #tpu.memory_space<vmem>>, vector<128x128xbf16>
    %cst_7 = arith.constant dense<0.000000e+00> : vector<8x128xf32>
    %12 = tpu.matmul %10, %11, %cst_7 {dimension_numbers = #tpu.dot_dimension_numbers<[1], [0], [0], [1], [0, 0, 1, 1], [], []>} : vector<8x128xbf16>, vector<128x128xbf16>, vector<8x128xf32> -> vector<8x128xf32>
    %13 = vector.extract_strided_slice %1 {offsets = [1, 0], sizes = [1, 128], strides = [1, 1]} : vector<8x128xf32> to vector<1x128xf32>
    %14 = vector.broadcast %13 : vector<1x128xf32> to vector<8x128xf32>
    %15 = arith.addf %12, %14 : vector<8x128xf32>
    %cst_8 = arith.constant 0.000000e+00 : f32
    %16 = vector.broadcast %cst_8 : f32 to vector<8x128xf32>
    %17 = arith.maximumf %15, %16 : vector<8x128xf32>
    %18 = arith.truncf %17 : vector<8x128xf32> to vector<8x128xbf16>
    %c256 = arith.constant 256 : index
    %c0_9 = arith.constant 0 : index
    %19 = vector.load %arg2[%c256, %c0_9] : memref<384x128xbf16, #tpu.memory_space<vmem>>, vector<128x128xbf16>
    %cst_10 = arith.constant dense<0.000000e+00> : vector<8x128xf32>
    %20 = tpu.matmul %18, %19, %cst_10 {dimension_numbers = #tpu.dot_dimension_numbers<[1], [0], [0], [1], [0, 0, 1, 1], [], []>} : vector<8x128xbf16>, vector<128x128xbf16>, vector<8x128xf32> -> vector<8x128xf32>
    %21 = vector.extract_strided_slice %1 {offsets = [2, 0], sizes = [1, 128], strides = [1, 1]} : vector<8x128xf32> to vector<1x128xf32>
    %22 = vector.broadcast %21 : vector<1x128xf32> to vector<8x128xf32>
    %23 = arith.addf %20, %22 : vector<8x128xf32>
    %24 = vector.extract_strided_slice %23 {offsets = [0, 0], sizes = [8, 8], strides = [1, 1]} : vector<8x128xf32> to vector<8x8xf32>
    %25 = vector.extract_strided_slice %23 {offsets = [0, 8], sizes = [8, 8], strides = [1, 1]} : vector<8x128xf32> to vector<8x8xf32>
    %26 = math.tanh %25 : vector<8x8xf32>
    %cst_11 = arith.constant 1.000000e+00 : f32
    %27 = vector.broadcast %cst_11 : f32 to vector<8x8xf32>
    %28 = arith.addf %26, %27 : vector<8x8xf32>
    %cst_12 = arith.constant 3.500000e+00 : f32
    %29 = vector.broadcast %cst_12 : f32 to vector<8x8xf32>
    %30 = arith.mulf %29, %28 : vector<8x8xf32>
    %cst_13 = arith.constant -5.000000e+00 : f32
    %31 = vector.broadcast %cst_13 : f32 to vector<8x8xf32>
    %32 = arith.addf %31, %30 : vector<8x8xf32>
    %33 = math.exp %32 : vector<8x8xf32>
    %34 = vector.extract_strided_slice %0 {offsets = [0, 120], sizes = [8, 8], strides = [1, 1]} : vector<8x128xf32> to vector<8x8xf32>
    %35 = arith.mulf %33, %34 : vector<8x8xf32>
    %36 = arith.addf %24, %35 : vector<8x8xf32>
    %37 = math.tanh %36 : vector<8x8xf32>
    %38 = vector.extract_strided_slice %1 {offsets = [3, 0], sizes = [1, 8], strides = [1, 1]} : vector<8x128xf32> to vector<1x8xf32>
    %39 = vector.extract_strided_slice %1 {offsets = [4, 0], sizes = [1, 8], strides = [1, 1]} : vector<8x128xf32> to vector<1x8xf32>
    %40 = vector.broadcast %38 : vector<1x8xf32> to vector<8x8xf32>
    %41 = arith.mulf %37, %40 : vector<8x8xf32>
    %42 = vector.broadcast %39 : vector<1x8xf32> to vector<8x8xf32>
    %43 = arith.addf %41, %42 : vector<8x8xf32>
    %44 = math.tanh %24 : vector<8x8xf32>
    %45 = vector.broadcast %38 : vector<1x8xf32> to vector<8x8xf32>
    %46 = arith.mulf %44, %45 : vector<8x8xf32>
    %47 = vector.broadcast %39 : vector<1x8xf32> to vector<8x8xf32>
    %48 = arith.addf %46, %47 : vector<8x8xf32>
    %49 = arith.mulf %34, %34 : vector<8x8xf32>
    %cst_14 = arith.constant -5.000000e-01 : f32
    %50 = vector.broadcast %cst_14 : f32 to vector<8x8xf32>
    %51 = arith.mulf %50, %49 : vector<8x8xf32>
    %52 = arith.subf %51, %32 : vector<8x8xf32>
    %cst_15 = arith.constant 0.918938517 : f32
    %53 = vector.broadcast %cst_15 : f32 to vector<8x8xf32>
    %54 = arith.subf %52, %53 : vector<8x8xf32>
    %55 = arith.mulf %37, %37 : vector<8x8xf32>
    %cst_16 = arith.constant 1.000000e+00 : f32
    %56 = vector.broadcast %cst_16 : f32 to vector<8x8xf32>
    %57 = arith.subf %56, %55 : vector<8x8xf32>
    %58 = vector.broadcast %38 : vector<1x8xf32> to vector<8x8xf32>
    %59 = arith.mulf %58, %57 : vector<8x8xf32>
    %cst_17 = arith.constant 9.99999997E-7 : f32
    %60 = vector.broadcast %cst_17 : f32 to vector<8x8xf32>
    %61 = arith.addf %59, %60 : vector<8x8xf32>
    %62 = math.log %61 : vector<8x8xf32>
    %63 = arith.subf %54, %62 : vector<8x8xf32>
    %cst_18 = arith.constant dense<0.000000e+00> : vector<8xf32>
    %64 = vector.multi_reduction <add>, %63, %cst_18 [1] : vector<8x8xf32> to vector<8xf32>
    %65 = vector.shape_cast %64 : vector<8xf32> to vector<8x1xf32>
    %cst_19 = arith.constant 0.000000e+00 : f32
    %66 = vector.broadcast %cst_19 : f32 to vector<8x128xf32>
    %c0_20 = arith.constant 0 : index
    %c0_21 = arith.constant 0 : index
    %67 = vector.load %arg4[%c0_20, %c0_21] : memref<8x128xf32, #tpu.memory_space<vmem>>, vector<8x128xf32>
    tpu.vector_store %arg4[%c0_20, %c0_21], %66 {strides = array<i32>} : memref<8x128xf32, #tpu.memory_space<vmem>>, vector<8x128xf32>,
    %c0_22 = arith.constant 0 : index
    %c0_23 = arith.constant 0 : index
    %68 = vector.load %arg4[%c0_22, %c0_23] : memref<8x128xf32, #tpu.memory_space<vmem>>, vector<8x8xf32>
    tpu.vector_store %arg4[%c0_22, %c0_23], %43 {strides = array<i32>} : memref<8x128xf32, #tpu.memory_space<vmem>>, vector<8x8xf32>,
    %c0_24 = arith.constant 0 : index
    %c8 = arith.constant 8 : index
    %69 = vector.load %arg4[%c0_24, %c8] : memref<8x128xf32, #tpu.memory_space<vmem>>, vector<8x8xf32>
    tpu.vector_store %arg4[%c0_24, %c8], %48 {strides = array<i32>} : memref<8x128xf32, #tpu.memory_space<vmem>>, vector<8x8xf32>,
    %c0_25 = arith.constant 0 : index
    %c16 = arith.constant 16 : index
    %70 = vector.load %arg4[%c0_25, %c16] : memref<8x128xf32, #tpu.memory_space<vmem>>, vector<8x1xf32>
    tpu.vector_store %arg4[%c0_25, %c16], %65 {strides = array<i32>} : memref<8x128xf32, #tpu.memory_space<vmem>>, vector<8x1xf32>,
    return
  }
  func.func @transform_0(%arg0: i32) -> (i32, i32) {
    %c0_i32 = arith.constant 0 : i32
    %c0_i32_0 = arith.constant 0 : i32
    return %arg0, %c0_i32 : i32, i32
  }
  func.func @transform_1(%arg0: i32) -> (i32, i32) {
    %c0_i32 = arith.constant 0 : i32
    %c0_i32_0 = arith.constant 0 : i32
    %c0_i32_1 = arith.constant 0 : i32
    return %c0_i32, %c0_i32_0 : i32, i32
  }
  func.func @transform_2(%arg0: i32) -> (i32, i32) {
    %c0_i32 = arith.constant 0 : i32
    %c0_i32_0 = arith.constant 0 : i32
    %c0_i32_1 = arith.constant 0 : i32
    return %c0_i32, %c0_i32_0 : i32, i32
  }
  func.func @transform_3(%arg0: i32) -> (i32, i32) {
    %c0_i32 = arith.constant 0 : i32
    %c0_i32_0 = arith.constant 0 : i32
    return %arg0, %c0_i32 : i32, i32
  }
}

</mosaic_0001>

<llo_original>
// kernel: actor_forward.1
$region0: #{actor_forward.1}
  #allocation0 [shape = 'u32[]', space=smem, size = 0x4, offset = 0x4, fixed_abs, tag = 'smem constant byte address 0x4 - core index']
  #allocation1 [shape = 'u32[144,128]{1,0:T(1,128)}', space=vmem, size = 0x12000, scoped, tag = 'internal scratch']
  %s0 = inlined_call_operand.vmem [shape: f32[8,128], index: 0, kind: input, shape index: {}]
  %s1 = inlined_call_operand.vmem [shape: bf16[384,128], index: 1, kind: input, shape index: {}]
  %s2 = inlined_call_operand.vmem [shape: f32[8,128], index: 2, kind: input, shape index: {}]
  %s3 = inlined_call_operand.vmem [shape: f32[8,128], index: 3, kind: output, shape index: {}]
  %s4 = sld [smem:[#allocation0]]
  $region22: #{actor_forward.1} parent=0
    _
  %s6 = ssub.s32 1, %s4
  %s7 = scalar_select 0, %s6, %s4
  // Predicated region
  $region2: #{actor_forward.1} parent=0 // pred_check
    _
  $region3: #{actor_forward.1} parent=0 // pred_check_branch
    %9 = sbr.rel (0) target = $region5
  $region4: #{actor_forward.1} parent=0 // pred_region
    _
  $region5: #{actor_forward.1} parent=0 // pred_fallthru
    _
  // Predicated region
  $region6: #{actor_forward.1} parent=0 // pred_check
    _
  $region7: #{actor_forward.1} parent=0 // pred_check_branch
    %11 = sbr.rel (0) target = $region9
  $region8: #{actor_forward.1} parent=0 // pred_region
    _
  $region9: #{actor_forward.1} parent=0 // pred_fallthru
    _
  // Predicated region
  $region10: #{actor_forward.1} parent=0 // pred_check
    _
  $region11: #{actor_forward.1} parent=0 // pred_check_branch
    %13 = sbr.rel (0) target = $region13
  $region12: #{actor_forward.1} parent=0 // pred_region
    _
  $region13: #{actor_forward.1} parent=0 // pred_fallthru
    _
  %v15 = vld [vmem:[%s0] sm:$0xff]
  %v16 = vld [vmem:[%s2] sm:$0xff]
  %v17 = vpack.c.bf16 %v15, %v15
  %v18 = vld [vmem:[%s1] sm:$0xf]
  %v19 = vld [vmem:[%s1 + $0x4] sm:$0xf]
  %v20 = vld [vmem:[%s1 + $0x8] sm:$0xf]
  %v21 = vld [vmem:[%s1 + $0xc] sm:$0xf]
  %v22 = vld [vmem:[%s1 + $0x10] sm:$0xf]
  %v23 = vld [vmem:[%s1 + $0x14] sm:$0xf]
  %v24 = vld [vmem:[%s1 + $0x18] sm:$0xf]
  %v25 = vld [vmem:[%s1 + $0x1c] sm:$0xf]
  %v26 = vld [vmem:[%s1 + $0x20] sm:$0xf]
  %v27 = vld [vmem:[%s1 + $0x24] sm:$0xf]
  %v28 = vld [vmem:[%s1 + $0x28] sm:$0xf]
  %v29 = vld [vmem:[%s1 + $0x2c] sm:$0xf]
  %v30 = vld [vmem:[%s1 + $0x30] sm:$0xf]
  %v31 = vld [vmem:[%s1 + $0x34] sm:$0xf]
  %v32 = vld [vmem:[%s1 + $0x38] sm:$0xf]
  %v33 = vld [vmem:[%s1 + $0x3c] sm:$0xf]
  %v34 = vlaneseq
  %v35 = vshrl.u32 %v34, 7
  %v36 = vsub.s32 0, %v35
  %v37 = vrot.slane %v16, %v36
  %v54 = vunpack.c.l.b16 %v18
  %v55 = vunpack.c.l.b16 %v19
  %v56 = vunpack.c.l.b16 %v20
  %v57 = vunpack.c.l.b16 %v21
  %v58 = vunpack.c.l.b16 %v22
  %v59 = vunpack.c.l.b16 %v23
  %v60 = vunpack.c.l.b16 %v24
  %v61 = vunpack.c.l.b16 %v25
  %v62 = vunpack.c.l.b16 %v26
  %v63 = vunpack.c.l.b16 %v27
  %v64 = vunpack.c.l.b16 %v28
  %v65 = vunpack.c.l.b16 %v29
  %v66 = vunpack.c.l.b16 %v30
  %v67 = vunpack.c.l.b16 %v31
  %v68 = vunpack.c.l.b16 %v32
  %v69 = vunpack.c.l.b16 %v33
  %v70 = vpack.c.b16 %v55, %v54
  %v71 = vpack.c.b16 %v57, %v56
  %v72 = vpack.c.b16 %v59, %v58
  %v73 = vpack.c.b16 %v61, %v60
  %v74 = vpack.c.b16 %v63, %v62
  %v75 = vpack.c.b16 %v65, %v64
  %v76 = vpack.c.b16 %v67, %v66
  %v77 = vpack.c.b16 %v69, %v68
  %86 = vmatprep.subr.bf16.mxu0 0
  %87 = vmatpush1.bf16.msra.mxu0 %v70
  %88 = vmatprep.subr.bf16.mxu0 0
  %89 = vmatpush1.bf16.msra.mxu0 %v71
  %90 = vmatprep.subr.bf16.mxu0 0
  %91 = vmatpush1.bf16.msra.mxu0 %v72
  %92 = vmatprep.subr.bf16.mxu0 0
  %93 = vmatpush1.bf16.msra.mxu0 %v73
  %94 = vmatprep.subr.bf16.mxu0 0
  %95 = vmatpush1.bf16.msra.mxu0 %v74
  %96 = vmatprep.subr.bf16.mxu0 0
  %97 = vmatpush1.bf16.msra.mxu0 %v75
  %98 = vmatprep.subr.bf16.mxu0 0
  %99 = vmatpush1.bf16.msra.mxu0 %v76
  %100 = vmatprep.subr.bf16.mxu0 0
  %101 = vmatpush1.bf16.msra.mxu0 %v77
  %102 = vmatprep.subr.bf16.mxu0 0
  %103 = vmatpush1.bf16.msra.mxu0 0
  %104 = vmatprep.subr.bf16.mxu0 0
  %105 = vmatpush1.bf16.msra.mxu0 0
  %106 = vmatprep.subr.bf16.mxu0 0
  %107 = vmatpush1.bf16.msra.mxu0 0
  %108 = vmatprep.subr.bf16.mxu0 0
  %109 = vmatpush1.bf16.msra.mxu0 0
  %110 = vmatprep.subr.bf16.mxu0 0
  %111 = vmatpush1.bf16.msra.mxu0 0
  %112 = vmatprep.subr.bf16.mxu0 0
  %113 = vmatpush1.bf16.msra.mxu0 0
  %114 = vmatprep.subr.bf16.mxu0 0
  %115 = vmatpush1.bf16.msra.mxu0 0
  %116 = vmatprep.subr.bf16.mxu0 0
  %117 = vmatpush1.bf16.msra.mxu0 0
  %118 = vmatprep.mubr.bf16.mxu0 0
  %119 = vmatmul.mubr.bf16.gmra.mrb[0].mxu0 %v17
  %v120 = vpop.f32.mrb[0].mxu0
  %v121 = vadd.f32 %v37, %v120
  %v122 = vpop.f32.mrb[0].mxu0
  %v123 = vpop.f32.mrb[0].mxu0
  %v124 = vpop.f32.mrb[0].mxu0
  %125 = vdwg.mxu0
  %v126 = vmax.f32 %v121, 0.0
  %v127 = vpack.c.bf16 %v126, %v126
  %v128 = vld [vmem:[%s1 + $0x40] sm:$0xf]
  %v129 = vld [vmem:[%s1 + $0x44] sm:$0xf]
  %v130 = vld [vmem:[%s1 + $0x48] sm:$0xf]
  %v131 = vld [vmem:[%s1 + $0x4c] sm:$0xf]
  %v132 = vld [vmem:[%s1 + $0x50] sm:$0xf]
  %v133 = vld [vmem:[%s1 + $0x54] sm:$0xf]
  %v134 = vld [vmem:[%s1 + $0x58] sm:$0xf]
  %v135 = vld [vmem:[%s1 + $0x5c] sm:$0xf]
  %v136 = vld [vmem:[%s1 + $0x60] sm:$0xf]
  %v137 = vld [vmem:[%s1 + $0x64] sm:$0xf]
  %v138 = vld [vmem:[%s1 + $0x68] sm:$0xf]
  %v139 = vld [vmem:[%s1 + $0x6c] sm:$0xf]
  %v140 = vld [vmem:[%s1 + $0x70] sm:$0xf]
  %v141 = vld [vmem:[%s1 + $0x74] sm:$0xf]
  %v142 = vld [vmem:[%s1 + $0x78] sm:$0xf]
  %v143 = vld [vmem:[%s1 + $0x7c] sm:$0xf]
  %v144 = vlaneseq
  %v145 = vshrl.u32 %v144, 7
  %v146 = vsub.s32 1, %v145
  %v147 = vrot.slane %v16, %v146
  %v164 = vunpack.c.l.b16 %v128
  %v165 = vunpack.c.l.b16 %v129
  %v166 = vunpack.c.l.b16 %v130
  %v167 = vunpack.c.l.b16 %v131
  %v168 = vunpack.c.l.b16 %v132
  %v169 = vunpack.c.l.b16 %v133
  %v170 = vunpack.c.l.b16 %v134
  %v171 = vunpack.c.l.b16 %v135
  %v172 = vunpack.c.l.b16 %v136
  %v173 = vunpack.c.l.b16 %v137
  %v174 = vunpack.c.l.b16 %v138
  %v175 = vunpack.c.l.b16 %v139
  %v176 = vunpack.c.l.b16 %v140
  %v177 = vunpack.c.l.b16 %v141
  %v178 = vunpack.c.l.b16 %v142
  %v179 = vunpack.c.l.b16 %v143
  %v180 = vpack.c.b16 %v165, %v164
  %v181 = vpack.c.b16 %v167, %v166
  %v182 = vpack.c.b16 %v169, %v168
  %v183 = vpack.c.b16 %v171, %v170
  %v184 = vpack.c.b16 %v173, %v172
  %v185 = vpack.c.b16 %v175, %v174
  %v186 = vpack.c.b16 %v177, %v176
  %v187 = vpack.c.b16 %v179, %v178
  %196 = vmatprep.subr.bf16.mxu0 0
  %197 = vmatpush1.bf16.msra.mxu0 %v180
  %198 = vmatprep.subr.bf16.mxu0 0
  %199 = vmatpush1.bf16.msra.mxu0 %v181
  %200 = vmatprep.subr.bf16.mxu0 0
  %201 = vmatpush1.bf16.msra.mxu0 %v182
  %202 = vmatprep.subr.bf16.mxu0 0
  %203 = vmatpush1.bf16.msra.mxu0 %v183
  %204 = vmatprep.subr.bf16.mxu0 0
  %205 = vmatpush1.bf16.msra.mxu0 %v184
  %206 = vmatprep.subr.bf16.mxu0 0
  %207 = vmatpush1.bf16.msra.mxu0 %v185
  %208 = vmatprep.subr.bf16.mxu0 0
  %209 = vmatpush1.bf16.msra.mxu0 %v186
  %210 = vmatprep.subr.bf16.mxu0 0
  %211 = vmatpush1.bf16.msra.mxu0 %v187
  %212 = vmatprep.subr.bf16.mxu0 0
  %213 = vmatpush1.bf16.msra.mxu0 0
  %214 = vmatprep.subr.bf16.mxu0 0
  %215 = vmatpush1.bf16.msra.mxu0 0
  %216 = vmatprep.subr.bf16.mxu0 0
  %217 = vmatpush1.bf16.msra.mxu0 0
  %218 = vmatprep.subr.bf16.mxu0 0
  %219 = vmatpush1.bf16.msra.mxu0 0
  %220 = vmatprep.subr.bf16.mxu0 0
  %221 = vmatpush1.bf16.msra.mxu0 0
  %222 = vmatprep.subr.bf16.mxu0 0
  %223 = vmatpush1.bf16.msra.mxu0 0
  %224 = vmatprep.subr.bf16.mxu0 0
  %225 = vmatpush1.bf16.msra.mxu0 0
  %226 = vmatprep.subr.bf16.mxu0 0
  %227 = vmatpush1.bf16.msra.mxu0 0
  %228 = vmatprep.mubr.bf16.mxu0 0
  %229 = vmatmul.mubr.bf16.gmra.mrb[0].mxu0 %v127
  %v230 = vpop.f32.mrb[0].mxu0
  %v231 = vadd.f32 %v147, %v230
  %v232 = vpop.f32.mrb[0].mxu0
  %v233 = vpop.f32.mrb[0].mxu0
  %v234 = vpop.f32.mrb[0].mxu0
  %235 = vdwg.mxu0
  %v236 = vmax.f32 %v231, 0.0
  %v237 = vpack.c.bf16 %v236, %v236
  %v238 = vld [vmem:[%s1 + $0x80] sm:$0xf]
  %v239 = vld [vmem:[%s1 + $0x84] sm:$0xf]
  %v240 = vld [vmem:[%s1 + $0x88] sm:$0xf]
  %v241 = vld [vmem:[%s1 + $0x8c] sm:$0xf]
  %v242 = vld [vmem:[%s1 + $0x90] sm:$0xf]
  %v243 = vld [vmem:[%s1 + $0x94] sm:$0xf]
  %v244 = vld [vmem:[%s1 + $0x98] sm:$0xf]
  %v245 = vld [vmem:[%s1 + $0x9c] sm:$0xf]
  %v246 = vld [vmem:[%s1 + $0xa0] sm:$0xf]
  %v247 = vld [vmem:[%s1 + $0xa4] sm:$0xf]
  %v248 = vld [vmem:[%s1 + $0xa8] sm:$0xf]
  %v249 = vld [vmem:[%s1 + $0xac] sm:$0xf]
  %v250 = vld [vmem:[%s1 + $0xb0] sm:$0xf]
  %v251 = vld [vmem:[%s1 + $0xb4] sm:$0xf]
  %v252 = vld [vmem:[%s1 + $0xb8] sm:$0xf]
  %v253 = vld [vmem:[%s1 + $0xbc] sm:$0xf]
  %v254 = vlaneseq
  %v255 = vshrl.u32 %v254, 7
  %v256 = vsub.s32 2, %v255
  %v257 = vrot.slane %v16, %v256
  %v274 = vunpack.c.l.b16 %v238
  %v275 = vunpack.c.l.b16 %v239
  %v276 = vunpack.c.l.b16 %v240
  %v277 = vunpack.c.l.b16 %v241
  %v278 = vunpack.c.l.b16 %v242
  %v279 = vunpack.c.l.b16 %v243
  %v280 = vunpack.c.l.b16 %v244
  %v281 = vunpack.c.l.b16 %v245
  %v282 = vunpack.c.l.b16 %v246
  %v283 = vunpack.c.l.b16 %v247
  %v284 = vunpack.c.l.b16 %v248
  %v285 = vunpack.c.l.b16 %v249
  %v286 = vunpack.c.l.b16 %v250
  %v287 = vunpack.c.l.b16 %v251
  %v288 = vunpack.c.l.b16 %v252
  %v289 = vunpack.c.l.b16 %v253
  %v290 = vpack.c.b16 %v275, %v274
  %v291 = vpack.c.b16 %v277, %v276
  %v292 = vpack.c.b16 %v279, %v278
  %v293 = vpack.c.b16 %v281, %v280
  %v294 = vpack.c.b16 %v283, %v282
  %v295 = vpack.c.b16 %v285, %v284
  %v296 = vpack.c.b16 %v287, %v286
  %v297 = vpack.c.b16 %v289, %v288
  %306 = vmatprep.subr.bf16.mxu0 0
  %307 = vmatpush1.bf16.msra.mxu0 %v290
  %308 = vmatprep.subr.bf16.mxu0 0
  %309 = vmatpush1.bf16.msra.mxu0 %v291
  %310 = vmatprep.subr.bf16.mxu0 0
  %311 = vmatpush1.bf16.msra.mxu0 %v292
  %312 = vmatprep.subr.bf16.mxu0 0
  %313 = vmatpush1.bf16.msra.mxu0 %v293
  %314 = vmatprep.subr.bf16.mxu0 0
  %315 = vmatpush1.bf16.msra.mxu0 %v294
  %316 = vmatprep.subr.bf16.mxu0 0
  %317 = vmatpush1.bf16.msra.mxu0 %v295
  %318 = vmatprep.subr.bf16.mxu0 0
  %319 = vmatpush1.bf16.msra.mxu0 %v296
  %320 = vmatprep.subr.bf16.mxu0 0
  %321 = vmatpush1.bf16.msra.mxu0 %v297
  %322 = vmatprep.subr.bf16.mxu0 0
  %323 = vmatpush1.bf16.msra.mxu0 0
  %324 = vmatprep.subr.bf16.mxu0 0
  %325 = vmatpush1.bf16.msra.mxu0 0
  %326 = vmatprep.subr.bf16.mxu0 0
  %327 = vmatpush1.bf16.msra.mxu0 0
  %328 = vmatprep.subr.bf16.mxu0 0
  %329 = vmatpush1.bf16.msra.mxu0 0
  %330 = vmatprep.subr.bf16.mxu0 0
  %331 = vmatpush1.bf16.msra.mxu0 0
  %332 = vmatprep.subr.bf16.mxu0 0
  %333 = vmatpush1.bf16.msra.mxu0 0
  %334 = vmatprep.subr.bf16.mxu0 0
  %335 = vmatpush1.bf16.msra.mxu0 0
  %336 = vmatprep.subr.bf16.mxu0 0
  %337 = vmatpush1.bf16.msra.mxu0 0
  %338 = vmatprep.mubr.bf16.mxu0 0
  %339 = vmatmul.mubr.bf16.gmra.mrb[0].mxu0 %v237
  %v340 = vpop.f32.mrb[0].mxu0
  %v341 = vadd.f32 %v257, %v340
  %v342 = vpop.f32.mrb[0].mxu0
  %v343 = vpop.f32.mrb[0].mxu0
  %v344 = vpop.f32.mrb[0].mxu0
  %345 = vdwg.mxu0
  %v346 = vtanh.pop %v341
  %v347 = vadd.f32 %v346, 1.0
  %v348 = vmul.f32 %v347, 3.5
  %v349 = vadd.f32 %v348, -5.0
  %v350 = vmul.f32 %v349, 1.442695
  %v351 = vpow.pop %v350
  %353 = vrot.lane.b32.xlu0 %v15, 16
  %v354 = vpop.permute.xlu0 %353
  %v356 = vmul.f32 %v351, %v354
  %358 = vrot.lane.b32.xlu0 %v356, 120
  %v359 = vpop.permute.xlu0 %358
  %v361 = vadd.f32 %v341, %v359
  %v362 = vtanh.pop %v361
  %v363 = vlaneseq
  %v364 = vshrl.u32 %v363, 7
  %v365 = vsub.s32 3, %v364
  %v366 = vrot.slane %v16, %v365
  %v367 = vmul.f32 %v362, %v366
  %v368 = vlaneseq
  %v369 = vshrl.u32 %v368, 7
  %v370 = vsub.s32 4, %v369
  %v371 = vrot.slane %v16, %v370
  %v372 = vadd.f32 %v367, %v371
  %v373 = vmul.f32 %v346, %v366
  %v374 = vadd.f32 %v373, %v371
  %v375 = vmul.f32 %v15, %v15
  %v376 = vmul.f32 %v375, -0.5
  %378 = vrot.lane.b32.xlu0 %v349, 112
  %v379 = vpop.permute.xlu0 %378
  %v381 = vsub.f32 %v376, %v379
  %v382 = vsub.f32 %v381, 0.9189385
  %v383 = vmul.f32 %v362, %v362
  %v384 = vsub.f32 1.0, %v383
  %v385 = vmul.f32 %v366, %v384
  %v386 = vadd.f32 %v385, 1e-06
  %v387 = vlog2.pop %v386
  %v388 = vmul.f32 %v387, 0.6931472
  %390 = vrot.lane.b32.xlu0 %v388, 120
  %v391 = vpop.permute.xlu0 %390
  %v393 = vsub.f32 %v382, %v391
  %395 = vrot.lane.b32.xlu0 %v393, 8
  %v396 = vpop.permute.xlu0 %395
  %vm398 = vcmask 64512
  %v399 = vsel %vm398, %v396, 0.0
  %400 = vadd.xlane.f32.xlu0 %v399
  %v401 = vpop.xlane.xlu0 %400
  %402 = vst [vmem:[%s3] sm:$0xff] 0.0
  %403 = vst.msk [vmem:[%s3] sm:$0xff] %vm398, %v372
  %405 = vrot.lane.b32.xlu0 %v374, 8
  %v406 = vpop.permute.xlu0 %405
  %vm408 = vcmask 130112
  %409 = vst.msk [vmem:[%s3] sm:$0xff] %vm408, %v406
  %vm410 = vcmask 138368
  %411 = vst.msk [vmem:[%s3] sm:$0xff] %vm410, %v401
  // Predicated region
  $region14: #{actor_forward.1} parent=0 // pred_check
    _
  $region15: #{actor_forward.1} parent=0 // pred_check_branch
    %413 = sbr.rel (0) target = $region17
  $region16: #{actor_forward.1} parent=0 // pred_region
    _
  $region17: #{actor_forward.1} parent=0 // pred_fallthru
    _
  // Predicated region
  $region18: #{actor_forward.1} parent=0 // pred_check
    _
  $region19: #{actor_forward.1} parent=0 // pred_check_branch
    %415 = sbr.rel (0) target = $region21
  $region20: #{actor_forward.1} parent=0 // pred_region
    _
  $region21: #{actor_forward.1} parent=0 // pred_fallthru
    _

</llo_original>
